<compile_context>
chip_gen: v7x
topology: tpu7x:2x2x1
jax: 0.10.0
libtpu: 0.0.40
codegen_flags: <defaults>
</compile_context>

<pallas_src>
import functools

import jax
import jax.numpy as jnp
from jax.experimental import pallas as pl
from jax.experimental.pallas import tpu as pltpu


_VMEM_LIMIT_BYTES = 32 * 1024 * 1024    # explicit scoped-VMEM limit; safe on
                                        # v5e/v6e (128 MiB phys) and v7x (64 MiB)
_MAX_TILE_BYTES = 4 * 1024 * 1024       # per-block bytes; ~4x (dbl-buffered
                                        # in + out) stays under the limit above
_SMALL_PROBLEM_BYTES = 2 * 1024 * 1024  # whole problem in one block -> no grid
_MAX_TILE_C = 8192                      # class-axis tile cap (multiple of 128)
_DEFAULT_TILE_C = 4096                  # used when C > _MAX_TILE_C
_MAX_TILE_N = 512


def _cosface_tiled_kernel(labels_ref, logits_ref, out_ref, *, s, m, tile_c):
    """Process one (tile_n, tile_c) block of the (N, C) logits."""
    labels = labels_ref[...]                                   # (tile_n, 1) i32
    logits = logits_ref[...]                                   # (tile_n, tile_c)
    # Global class index of each lane in this C-block.
    col = (jax.lax.broadcasted_iota(jnp.int32, logits.shape, 1)
           + pl.program_id(1) * tile_c)
    # labels == -1 can never match a non-negative column index, so the
    # "ignored row" case falls out of the equality test for free.
    is_target = col == labels
    # Folded: (logits - m) * s  ==  logits * s + (-m * s) on target elems only.
    out_ref[...] = logits * s + jnp.where(
        is_target, jnp.float32(-m * s), jnp.float32(0.0))


def _cosface_small_kernel(labels_ref, logits_ref, out_ref, *, s, m):
    """Single-block variant (no grid, no program_id)."""
    labels = labels_ref[...]
    logits = logits_ref[...]
    col = jax.lax.broadcasted_iota(jnp.int32, logits.shape, 1)
    is_target = col == labels
    out_ref[...] = logits * s + jnp.where(
        is_target, jnp.float32(-m * s), jnp.float32(0.0))


def _pick_tiles(N, C, tile_n, tile_c):
    """VMEM-budget-aware tile selection (user overrides respected)."""
    if tile_c is None:
        tile_c = C if C <= _MAX_TILE_C else _DEFAULT_TILE_C
    if tile_c < C:
        assert tile_c % 128 == 0, "class tile must be a multiple of 128"
    if tile_n is None:
        budget_rows = max(8, _MAX_TILE_BYTES // (4 * tile_c))
        budget_rows = min(budget_rows, _MAX_TILE_N)
        tile_n = N if budget_rows >= N else (budget_rows // 8) * 8
    if tile_n < N:
        assert tile_n % 8 == 0, "row tile must be a multiple of 8"
    return tile_n, tile_c


def cosface(logits, labels, *, s=64.0, m=0.4, tile_n=None, tile_c=None):
    """logits: (N, C) float32, labels: (N,) int32. Returns (N, C) float32."""
    N, C = logits.shape
    labels2d = labels.reshape(N, 1).astype(jnp.int32)

    small = (tile_n is None and tile_c is None
             and N * C * jnp.dtype(logits.dtype).itemsize <= _SMALL_PROBLEM_BYTES)
    if small:
        # Whole problem fits in a single VMEM block: skip pipeline machinery.
        return pl.pallas_call(
            functools.partial(_cosface_small_kernel, s=s, m=m),
            out_shape=jax.ShapeDtypeStruct((N, C), logits.dtype),
            input_output_aliases={1: 0},
            compiler_params=pltpu.CompilerParams(
                vmem_limit_bytes=_VMEM_LIMIT_BYTES),
        )(labels2d, logits)

    tile_n, tile_c = _pick_tiles(N, C, tile_n, tile_c)
    # Class axis is last (fastest) -> labels block (depends only on i) is held
    # resident across all class tiles of a row tile.
    grid = (pl.cdiv(N, tile_n), pl.cdiv(C, tile_c))
    kernel = functools.partial(_cosface_tiled_kernel, s=s, m=m, tile_c=tile_c)

    return pl.pallas_call(
        kernel,
        out_shape=jax.ShapeDtypeStruct((N, C), logits.dtype),
        grid_spec=pltpu.PrefetchScalarGridSpec(
            num_scalar_prefetch=0,
            grid=grid,
            in_specs=[
                pl.BlockSpec((tile_n, 1), lambda i, j: (i, 0)),       # labels
                pl.BlockSpec((tile_n, tile_c), lambda i, j: (i, j)),  # logits
            ],
            out_specs=pl.BlockSpec((tile_n, tile_c), lambda i, j: (i, j)),
        ),
        input_output_aliases={1: 0},
        compiler_params=pltpu.CompilerParams(
            dimension_semantics=("parallel", "parallel"),
            vmem_limit_bytes=_VMEM_LIMIT_BYTES,
        ),
    )(labels2d, logits)


def cosface_ref(logits, labels, *, s=64.0, m=0.4):
    """Pure-JAX reference mirroring the PyTorch forward."""
    N, C = logits.shape
    col = jnp.arange(C)[None, :]
    lab = labels[:, None]
    mask = (col == lab) & (lab != -1)
    return jnp.where(mask, logits - m, logits) * s


if __name__ == "__main__":
    key = jax.random.PRNGKey(0)
    k1, k2, k3, k4, k5, k6 = jax.random.split(key, 6)

    # --- Case 1: tiny problem -> single-block (no-grid) fast path ------------
    N1, C1 = 8, 128
    logits1 = jax.random.normal(k1, (N1, C1), dtype=jnp.float32)
    labels1 = jax.random.randint(k2, (N1,), 0, C1, dtype=jnp.int32)
    labels1 = labels1.at[3].set(-1)  # one ignored row
    ref1 = cosface_ref(logits1, labels1, s=64.0, m=0.4)

    out1 = jax.block_until_ready(cosface(logits1, labels1, s=64.0, m=0.4))
    assert jnp.allclose(out1, ref1, atol=1e-4, rtol=1e-5), "small-path mismatch"

    # --- Case 2: exercise the tiled (row x class) grid path ------------------
    N2, C2 = 32, 256
    logits2 = jax.random.normal(k3, (N2, C2), dtype=jnp.float32)
    labels2 = jax.random.randint(k4, (N2,), 0, C2, dtype=jnp.int32)
    labels2 = labels2.at[5].set(-1)
    ref2 = cosface_ref(logits2, labels2, s=64.0, m=0.4)

    out2 = jax.block_until_ready(
        cosface(logits2, labels2, s=64.0, m=0.4, tile_n=16, tile_c=128))
    assert jnp.allclose(out2, ref2, atol=1e-4, rtol=1e-5), "tiled-path mismatch"

    # --- Case 3: ragged edges (N not %8, C not %128) on the small path -------
    N3, C3 = 10, 200
    logits3 = jax.random.normal(k5, (N3, C3), dtype=jnp.float32)
    labels3 = jax.random.randint(k6, (N3,), 0, C3, dtype=jnp.int32)
    labels3 = labels3.at[0].set(-1)
    ref3 = cosface_ref(logits3, labels3, s=64.0, m=0.4)

    out3 = jax.block_until_ready(cosface(logits3, labels3, s=64.0, m=0.4))
    assert jnp.allclose(out3, ref3, atol=1e-4, rtol=1e-5), "ragged-path mismatch"

    print("KERNEL_OK")
</pallas_src>

<mosaic_0001>
module attributes {stable_mosaic.version = 11 : i64} {
  func.func @_cosface_small_kernel(%arg0: memref<8x1xi32, #tpu.memory_space<vmem>>, %arg1: memref<8x128xf32, #tpu.memory_space<vmem>>, %arg2: memref<8x128xf32, #tpu.memory_space<vmem>>) attributes {dimension_semantics = [], scalar_prefetch = 0 : i64, scratch_operands = 0 : i64, tpu.core_type = #tpu.core_type<tc>} {
    %c0 = arith.constant 0 : index
    %c0_0 = arith.constant 0 : index
    %0 = vector.load %arg0[%c0, %c0_0] : memref<8x1xi32, #tpu.memory_space<vmem>>, vector<8x1xi32>
    %c0_1 = arith.constant 0 : index
    %c0_2 = arith.constant 0 : index
    %1 = vector.load %arg1[%c0_1, %c0_2] : memref<8x128xf32, #tpu.memory_space<vmem>>, vector<8x128xf32>
    %2 = tpu.iota {dimensions = array<i32: 1>} : vector<8x128xi32>
    %3 = vector.broadcast %0 : vector<8x1xi32> to vector<8x128xi32>
    %4 = arith.cmpi eq, %2, %3 : vector<8x128xi32>
    %cst = arith.constant 6.400000e+01 : f32
    %5 = vector.broadcast %cst : f32 to vector<8x128xf32>
    %6 = arith.mulf %1, %5 : vector<8x128xf32>
    %cst_3 = arith.constant -2.560000e+01 : f32
    %cst_4 = arith.constant 0.000000e+00 : f32
    %7 = vector.broadcast %cst_3 : f32 to vector<8x128xf32>
    %8 = vector.broadcast %cst_4 : f32 to vector<8x128xf32>
    %9 = arith.select %4, %7, %8 : vector<8x128xi1>, vector<8x128xf32>
    %10 = arith.addf %6, %9 : vector<8x128xf32>
    %c0_5 = arith.constant 0 : index
    %c0_6 = arith.constant 0 : index
    %11 = vector.load %arg2[%c0_5, %c0_6] : memref<8x128xf32, #tpu.memory_space<vmem>>, vector<8x128xf32>
    tpu.vector_store %arg2[%c0_5, %c0_6], %10 {strides = array<i32>} : memref<8x128xf32, #tpu.memory_space<vmem>>, vector<8x128xf32>,
    return
  }
}

</mosaic_0001>

<llo_original>
// kernel: tpu_custom_call.1
$region0: #{tpu_custom_call.1}
  #allocation0 [shape = 'u32[]', space=smem, size = 0x4, offset = 0x4, fixed_abs, tag = 'smem constant byte address 0x4 - core index']
  #allocation1 [shape = 'u32[144,128]{1,0:T(1,128)}', space=vmem, size = 0x12000, scoped, tag = 'internal scratch']
  %s0 = inlined_call_operand.vmem [shape: s32[8,1], index: 0, kind: input, shape index: {}]
  %s1 = inlined_call_operand.hbm [shape: f32[8,128], index: 1, kind: input, shape index: {}, may-alias: {1,2}]
  %s2 = inlined_call_operand.hbm [shape: f32[8,128], index: 2, kind: output, shape index: {}, may-alias: {1,2}]
  %s3 = sld [smem:[#allocation0]]
  $region22: #{tpu_custom_call.1} parent=0
    _
  %s5 = ssub.s32 1, %s3
  %s6 = scalar_select 0, %s5, %s3
  $region1: #{tpu_custom_call.1} parent=0
    #allocation2 [shape = 'u8[4096]{0}', space=vmem, size = 0x1000, scoped, tag = 'input window, operand 1, single buffered']
    #allocation3 [shape = 's32[1]{0}', space=sflag, size = 0x4, scoped, tag = 'scoped memory for tpu_custom_call.1']
    #allocation4 [shape = 's32[1]{0}', space=sflag, size = 0x4, scoped, tag = 'scoped memory for tpu_custom_call.1']
    #allocation5 [shape = 'u8[4096]{0}', space=vmem, size = 0x1000, scoped, tag = 'output window, operand 0, single buffered']
    %7 = vsyncpa [#allocation3], 0
    %8 = vsyncpa [#allocation4], 0
    // Predicated region
    $region2: #{tpu_custom_call.1} parent=1 // pred_check
      _
    $region3: #{tpu_custom_call.1} parent=1 // pred_check_branch
      %10 = sbr.rel (0) target = $region5
    $region4: #{tpu_custom_call.1} parent=1 // pred_region
      _
    $region5: #{tpu_custom_call.1} parent=1 // pred_fallthru
      _
    // Predicated region
    $region6: #{tpu_custom_call.1} parent=1 // pred_check
      _
    $region7: #{tpu_custom_call.1} parent=1 // pred_check_branch
      %12 = sbr.rel (0) target = $region9
    $region8: #{tpu_custom_call.1} parent=1 // pred_region
      %s14 = ssub.s32 128, 128
      %15 = vsyncadd [#allocation3], %s14
      %s17 = sshll.u32 [#allocation2], 4
      %s18 = int_to_ptr.vmem [resolvable:$true] %s17
      %20 = dma.hbm_to_vmem [thread:$0]  %s1, 128, %s18, [#allocation3]
    $region9: #{tpu_custom_call.1} parent=1 // pred_fallthru
      _
    // Predicated region
    $region10: #{tpu_custom_call.1} parent=1 // pred_check
      _
    $region11: #{tpu_custom_call.1} parent=1 // pred_check_branch
      %22 = sbr.rel (0) target = $region13
    $region12: #{tpu_custom_call.1} parent=1 // pred_region
      %23 = dma.done [#allocation3], 128
    $region13: #{tpu_custom_call.1} parent=1 // pred_fallthru
      _
    %v24 = vld [vmem:[%s0] sm:$0xff]
    %v25 = vld [vmem:[#allocation2] sm:$0xff]
    %v26 = vlaneseq
    %v27 = vand.u32 %v26, 127
    %28 = vset.pattern.permute.xlu0 0
    %29 = vperm.xlu0 %28, %v24
    %v30 = vpop.permute.xlu0 %29
    %vm31 = vcmp.eq.s32.totalorder %v27, %v30
    %v32 = vmul.f32 %v25, 64.0
    %v33 = vsel %vm31, -25.6, 0.0
    %v34 = vadd.f32 %v32, %v33
    %35 = vst [vmem:[#allocation5] sm:$0xff] %v34
    // Predicated region
    $region14: #{tpu_custom_call.1} parent=1 // pred_check
      _
    $region15: #{tpu_custom_call.1} parent=1 // pred_check_branch
      %37 = sbr.rel (0) target = $region17
    $region16: #{tpu_custom_call.1} parent=1 // pred_region
      %s39 = ssub.s32 128, 128
      %40 = vsyncadd [#allocation4], %s39
      %s42 = sshll.u32 [#allocation5], 4
      %s43 = int_to_ptr.vmem [resolvable:$true] %s42
      %45 = dma.vmem_to_hbm [thread:$0]  %s43, 128, %s2, [#allocation4]
    $region17: #{tpu_custom_call.1} parent=1 // pred_fallthru
      _
    // Predicated region
    $region18: #{tpu_custom_call.1} parent=1 // pred_check
      _
    $region19: #{tpu_custom_call.1} parent=1 // pred_check_branch
      %47 = sbr.rel (0) target = $region21
    $region20: #{tpu_custom_call.1} parent=1 // pred_region
      %48 = dma.done [#allocation4], 128
    $region21: #{tpu_custom_call.1} parent=1 // pred_fallthru
      _
    %49 = vsyncpa [#allocation3], 1
    %50 = vsyncpa [#allocation4], 1

</llo_original>
